<compile_context>
chip_gen: v6e
topology: v6e:2x2x1
jax: 0.10.0
libtpu: 0.0.40
codegen_flags: <defaults>
</compile_context>

<pallas_src>
import jax
import jax.numpy as jnp
from jax import lax
from jax.experimental import pallas as pl
from jax.experimental.pallas import tpu as pltpu


def _make_sumsq_kernel(feat, tb, tf, need_feat_mask):
    """Kernel: per-sample sum of squared differences, reduced over feature tiles."""

    def kernel(p_ref, l_ref, o_ref, acc_ref):
        k = pl.program_id(1)  # feature (reduction) axis — last grid axis

        @pl.when(k == 0)
        def _():
            acc_ref[...] = jnp.zeros_like(acc_ref)

        # Cast per-tile in VMEM (VPU has slack); inputs stay in their HBM dtype.
        d = p_ref[...].astype(jnp.float32) - l_ref[...].astype(jnp.float32)
        sq = d * d

        if need_feat_mask:
            # Mask out-of-range feature columns of the ragged last tile.
            col = lax.broadcasted_iota(jnp.int32, (tb, tf), 1) + k * tf
            sq = jnp.where(col < feat, sq, 0.0)

        # Per-row (per-sample) partial sum; XLU reduction hides under the DMA.
        acc_ref[...] += jnp.sum(sq, axis=1, keepdims=True)  # (tb, 1)

        @pl.when(k == pl.num_programs(1) - 1)
        def _():
            o_ref[...] = acc_ref[...]

    return kernel


def tensor_per_atom_rmse(preds, labels, n_atoms, *, batch_tile=256, feat_tile=512):
    """Pallas implementation of TensorPerAtomRMSE.forward."""
    batch = preds.shape[0]
    preds2 = preds.reshape(batch, -1)    # no dtype cast, no padding copies
    labels2 = labels.reshape(batch, -1)
    feat = preds2.shape[1]

    # ---- feature tiling: full extent if small, else lane-aligned tiles ----
    if feat <= feat_tile:
        tf, n_ft, need_feat_mask = feat, 1, False
    else:
        tf = max(128, (feat_tile // 128) * 128)
        n_ft = pl.cdiv(feat, tf)
        need_feat_mask = (feat % tf) != 0

    # ---- batch tiling: full extent if small, else sublane-aligned tiles ----
    # Round to the sublane-packing granularity of the input dtype.
    sub = {4: 8, 2: 16, 1: 32}.get(jnp.dtype(preds2.dtype).itemsize, 8)
    if batch <= batch_tile:
        tb, n_bt = batch, 1
    else:
        tb = max(sub, (batch_tile // sub) * sub)
        n_bt = pl.cdiv(batch, tb)
    # NOTE: out-of-range rows of a ragged last batch tile accumulate garbage,
    # but row sums are independent and Pallas drops the OOB output writes.

    kernel = _make_sumsq_kernel(feat, tb, tf, need_feat_mask)

    sums = pl.pallas_call(
        kernel,
        out_shape=jax.ShapeDtypeStruct((batch, 1), jnp.float32),
        grid_spec=pltpu.PrefetchScalarGridSpec(
            num_scalar_prefetch=0,
            grid=(n_bt, n_ft),
            in_specs=[
                pl.BlockSpec((tb, tf), lambda b, k: (b, k)),
                pl.BlockSpec((tb, tf), lambda b, k: (b, k)),
            ],
            out_specs=pl.BlockSpec((tb, 1), lambda b, k: (b, 0)),
            scratch_shapes=[pltpu.VMEM((tb, 1), jnp.float32)],
        ),
        compiler_params=pltpu.CompilerParams(
            # batch axis parallel (2 TCs on v7x), feature axis is the reduction
            dimension_semantics=("parallel", "arbitrary"),
            # headroom above v5e's 16 MiB default, still within v7x's 64 MiB
            vmem_limit_bytes=32 * 1024 * 1024,
        ),
    )(preds2, labels2)

    # Epilogue in plain JAX: 1/n^2 scaling, mean over the TRUE batch, sqrt.
    n = n_atoms.reshape(batch).astype(jnp.float32)
    per_sample = sums[:, 0] / (n * n)
    return jnp.sqrt(jnp.mean(per_sample))


def _reference(preds, labels, n_atoms):
    batch = preds.shape[0]
    p = preds.reshape(batch, -1).astype(jnp.float32)
    l = labels.reshape(batch, -1).astype(jnp.float32)
    n = n_atoms.astype(jnp.float32)
    mse = jnp.mean(jnp.sum((p - l) ** 2, axis=1) / n**2)
    return jnp.sqrt(mse)


if __name__ == "__main__":
    key = jax.random.PRNGKey(0)
    k1, k2, k3, k4 = jax.random.split(key, 4)

    # Case 1: per-molecule 3x3 tensors (e.g. polarizability), batch of 2.
    batch = 2
    preds = jax.random.normal(k1, (batch, 3, 3), dtype=jnp.float32)
    labels = jax.random.normal(k2, (batch, 3, 3), dtype=jnp.float32)
    n_atoms = jnp.array([5.0, 8.0], dtype=jnp.float32)

    loss = jax.block_until_ready(tensor_per_atom_rmse(preds, labels, n_atoms))
    ref = _reference(preds, labels, n_atoms)
    assert jnp.allclose(loss, ref, rtol=1e-5, atol=1e-6), (loss, ref)

    # Case 2: exercise ragged batch/feature tiles + in-kernel feature masking.
    b2, f2 = 20, 300
    p2 = jax.random.normal(k3, (b2, f2), dtype=jnp.float32)
    l2 = jax.random.normal(k4, (b2, f2), dtype=jnp.float32)
    na2 = jnp.arange(1, b2 + 1, dtype=jnp.float32)
    loss2 = jax.block_until_ready(
        tensor_per_atom_rmse(p2, l2, na2, batch_tile=8, feat_tile=128)
    )
    ref2 = _reference(p2, l2, na2)
    assert jnp.allclose(loss2, ref2, rtol=1e-5, atol=1e-6), (loss2, ref2)

    print("KERNEL_OK")
</pallas_src>

<mosaic_0001>
module attributes {stable_mosaic.version = 11 : i64} {
  func.func @kernel(%arg0: i32, %arg1: i32, %arg2: memref<2x9xf32, #tpu.memory_space<vmem>>, %arg3: memref<2x9xf32, #tpu.memory_space<vmem>>, %arg4: memref<2x1xf32, #tpu.memory_space<vmem>>, %arg5: memref<2x1xf32, #tpu.memory_space<vmem>>) attributes {dimension_semantics = [#tpu.dimension_semantics<parallel>, #tpu.dimension_semantics<arbitrary>], iteration_bounds = array<i64: 1, 1>, scalar_prefetch = 0 : i64, scratch_operands = 1 : i64, tpu.core_type = #tpu.core_type<tc>, window_params = [{transform_indices = @transform_0, window_bounds = array<i64: 2, 9>}, {transform_indices = @transform_1, window_bounds = array<i64: 2, 9>}, {transform_indices = @transform_2, window_bounds = array<i64: 2, 1>}]} {
    %c0_i32 = arith.constant 0 : i32
    %0 = arith.cmpi eq, %arg1, %c0_i32 : i32
    %1 = arith.extui %0 : i1 to i32
    %c0_i32_0 = arith.constant 0 : i32
    %2 = arith.cmpi ne, %1, %c0_i32_0 : i32
    scf.if %2 {
      %cst_10 = arith.constant 0.000000e+00 : f32
      %15 = vector.broadcast %cst_10 : f32 to vector<2x1xf32>
      %c0_11 = arith.constant 0 : index
      %c0_12 = arith.constant 0 : index
      %16 = vector.load %arg5[%c0_11, %c0_12] : memref<2x1xf32, #tpu.memory_space<vmem>>, vector<2x1xf32>
      tpu.vector_store %arg5[%c0_11, %c0_12], %15 {strides = array<i32>} : memref<2x1xf32, #tpu.memory_space<vmem>>, vector<2x1xf32>,
    } else {
    }
    %c0 = arith.constant 0 : index
    %c0_1 = arith.constant 0 : index
    %3 = vector.load %arg2[%c0, %c0_1] : memref<2x9xf32, #tpu.memory_space<vmem>>, vector<2x9xf32>
    %c0_2 = arith.constant 0 : index
    %c0_3 = arith.constant 0 : index
    %4 = vector.load %arg3[%c0_2, %c0_3] : memref<2x9xf32, #tpu.memory_space<vmem>>, vector<2x9xf32>
    %5 = arith.subf %3, %4 : vector<2x9xf32>
    %6 = arith.mulf %5, %5 : vector<2x9xf32>
    %c0_4 = arith.constant 0 : index
    %c0_5 = arith.constant 0 : index
    %7 = vector.load %arg5[%c0_4, %c0_5] : memref<2x1xf32, #tpu.memory_space<vmem>>, vector<2x1xf32>
    %cst = arith.constant dense<0.000000e+00> : vector<2xf32>
    %8 = vector.multi_reduction <add>, %6, %cst [1] : vector<2x9xf32> to vector<2xf32>
    %9 = vector.shape_cast %8 : vector<2xf32> to vector<2x1xf32>
    %10 = arith.addf %7, %9 : vector<2x1xf32>
    %c0_6 = arith.constant 0 : index
    %c0_7 = arith.constant 0 : index
    %11 = vector.load %arg5[%c0_6, %c0_7] : memref<2x1xf32, #tpu.memory_space<vmem>>, vector<2x1xf32>
    tpu.vector_store %arg5[%c0_6, %c0_7], %10 {strides = array<i32>} : memref<2x1xf32, #tpu.memory_space<vmem>>, vector<2x1xf32>,
    %c0_i32_8 = arith.constant 0 : i32
    %12 = arith.cmpi eq, %arg1, %c0_i32_8 : i32
    %13 = arith.extui %12 : i1 to i32
    %c0_i32_9 = arith.constant 0 : i32
    %14 = arith.cmpi ne, %13, %c0_i32_9 : i32
    scf.if %14 {
      %c0_10 = arith.constant 0 : index
      %c0_11 = arith.constant 0 : index
      %15 = vector.load %arg5[%c0_10, %c0_11] : memref<2x1xf32, #tpu.memory_space<vmem>>, vector<2x1xf32>
      %c0_12 = arith.constant 0 : index
      %c0_13 = arith.constant 0 : index
      %16 = vector.load %arg4[%c0_12, %c0_13] : memref<2x1xf32, #tpu.memory_space<vmem>>, vector<2x1xf32>
      tpu.vector_store %arg4[%c0_12, %c0_13], %15 {strides = array<i32>} : memref<2x1xf32, #tpu.memory_space<vmem>>, vector<2x1xf32>,
    } else {
    }
    return
  }
  func.func @transform_0(%arg0: i32, %arg1: i32) -> (i32, i32) {
    %c0_i32 = arith.constant 0 : i32
    return %arg0, %arg1 : i32, i32
  }
  func.func @transform_1(%arg0: i32, %arg1: i32) -> (i32, i32) {
    %c0_i32 = arith.constant 0 : i32
    return %arg0, %arg1 : i32, i32
  }
  func.func @transform_2(%arg0: i32, %arg1: i32) -> (i32, i32) {
    %c0_i32 = arith.constant 0 : i32
    %c0_i32_0 = arith.constant 0 : i32
    return %arg0, %c0_i32 : i32, i32
  }
}

</mosaic_0001>

<llo_original>
// kernel: tpu_custom_call.1
$region0: #{tpu_custom_call.1}
  #allocation0 [shape = 'u32[]', space=smem, size = 0x4, offset = 0x4, fixed_abs, tag = 'smem constant byte address 0x4 - core index']
  #allocation1 [shape = 'u32[144,128]{1,0:T(1,128)}', space=vmem, size = 0x12000, scoped, tag = 'internal scratch']
  #allocation2 [shape = 'f32[2,1]{1,0:T(2,128)}', space=vmem, size = 0x400, scoped, tag = 'scratch operand']
  %s0 = inlined_call_operand.hbm [shape: f32[2,9], index: 0, kind: input, shape index: {}]
  %s1 = inlined_call_operand.hbm [shape: f32[2,9], index: 1, kind: input, shape index: {}]
  %s2 = inlined_call_operand.vmem [shape: f32[2,1], index: 2, kind: output, shape index: {}]
  %s3 = sld [smem:[#allocation0]]
  $region34: #{tpu_custom_call.1} parent=0
    _
  %s5 = ssub.s32 1, %s3
  %s6 = scalar_select 0, %s5, %s3
  $region1: #{tpu_custom_call.1} parent=0
    #allocation3 [shape = 'u8[1024]{0}', space=vmem, size = 0x400, scoped, tag = 'input window, operand 0, single buffered']
    #allocation4 [shape = 's32[1]{0}', space=sflag, size = 0x4, scoped, tag = 'scoped memory for tpu_custom_call.1']
    #allocation5 [shape = 'u8[1024]{0}', space=vmem, size = 0x400, scoped, tag = 'input window, operand 1, single buffered']
    #allocation6 [shape = 's32[1]{0}', space=sflag, size = 0x4, scoped, tag = 'scoped memory for tpu_custom_call.1']
    %7 = vsyncpa [#allocation4], 0
    %8 = vsyncpa [#allocation6], 0
    // Predicated region
    $region2: #{tpu_custom_call.1} parent=1 // pred_check
      _
    $region3: #{tpu_custom_call.1} parent=1 // pred_check_branch
      %10 = sbr.rel (0) target = $region5
    $region4: #{tpu_custom_call.1} parent=1 // pred_region
      %s12 = ssub.s32 32, 32
      %13 = vsyncadd [#allocation4], %s12
      %s15 = sshll.u32 [#allocation3], 4
      %s16 = int_to_ptr.vmem [resolvable:$true] %s15
      %18 = dma.hbm_to_vmem [thread:$0]  %s0, 32, %s16, [#allocation4]
    $region5: #{tpu_custom_call.1} parent=1 // pred_fallthru
      _
    // Predicated region
    $region6: #{tpu_custom_call.1} parent=1 // pred_check
      _
    $region7: #{tpu_custom_call.1} parent=1 // pred_check_branch
      %20 = sbr.rel (0) target = $region9
    $region8: #{tpu_custom_call.1} parent=1 // pred_region
      %s22 = ssub.s32 32, 32
      %23 = vsyncadd [#allocation6], %s22
      %s25 = sshll.u32 [#allocation5], 4
      %s26 = int_to_ptr.vmem [resolvable:$true] %s25
      %28 = dma.hbm_to_vmem [thread:$0]  %s1, 32, %s26, [#allocation6]
    $region9: #{tpu_custom_call.1} parent=1 // pred_fallthru
      _
    // Predicated region
    $region10: #{tpu_custom_call.1} parent=1 // pred_check
      _
    $region11: #{tpu_custom_call.1} parent=1 // pred_check_branch
      %30 = sbr.rel (0) target = $region13
    $region12: #{tpu_custom_call.1} parent=1 // pred_region
      %31 = dma.done [#allocation4], 32
    $region13: #{tpu_custom_call.1} parent=1 // pred_fallthru
      _
    // Predicated region
    $region14: #{tpu_custom_call.1} parent=1 // pred_check
      _
    $region15: #{tpu_custom_call.1} parent=1 // pred_check_branch
      %33 = sbr.rel (0) target = $region17
    $region16: #{tpu_custom_call.1} parent=1 // pred_region
      %34 = dma.done [#allocation6], 32
    $region17: #{tpu_custom_call.1} parent=1 // pred_fallthru
      _
    %p35 = scmp.eq.s32.totalorder 0, 0
    // Predicated region
    $region18: #{tpu_custom_call.1} parent=1 // pred_check
      %p36 = pneg %p35
    $region19: #{tpu_custom_call.1} parent=1 // pred_check_branch
      %38 = sbr.rel (%p36) target = $region21
    $region20: #{tpu_custom_call.1} parent=1 // pred_region
      %vm39 = vcmask 1024
      %40 = vst.msk [vmem:[#allocation2] sm:$0x3] %vm39, 0.0
    $region21: #{tpu_custom_call.1} parent=1 // pred_fallthru
      _
    %v41 = vld [vmem:[#allocation3] sm:$0x3]
    %v42 = vld [vmem:[#allocation5] sm:$0x3]
    %v43 = vsub.f32 %v41, %v42
    %v44 = vmul.f32 %v43, %v43
    %v45 = vld [vmem:[#allocation2] sm:$0x3]
    %vm46 = vcmask 66560
    %v47 = vsel %vm46, %v44, 0.0
    %48 = vadd.xlane.f32.xlu0 %v47
    %v49 = vpop.xlane.xlu0 %48
    %v50 = vadd.f32 %v45, %v49
    %vm51 = vcmask 1024
    %52 = vst.msk [vmem:[#allocation2] sm:$0x3] %vm51, %v50
    // Predicated region
    $region22: #{tpu_custom_call.1} parent=1 // pred_check
      %p53 = pneg %p35
    $region23: #{tpu_custom_call.1} parent=1 // pred_check_branch
      %55 = sbr.rel (%p53) target = $region25
    $region24: #{tpu_custom_call.1} parent=1 // pred_region
      %v56 = vld [vmem:[#allocation2] sm:$0x3]
      %57 = vst.msk [vmem:[%s2] sm:$0x3] %vm51, %v56
    $region25: #{tpu_custom_call.1} parent=1 // pred_fallthru
      _
    // Predicated region
    $region26: #{tpu_custom_call.1} parent=1 // pred_check
      _
    $region27: #{tpu_custom_call.1} parent=1 // pred_check_branch
      %59 = sbr.rel (0) target = $region29
    $region28: #{tpu_custom_call.1} parent=1 // pred_region
      _
    $region29: #{tpu_custom_call.1} parent=1 // pred_fallthru
      _
    // Predicated region
    $region30: #{tpu_custom_call.1} parent=1 // pred_check
      _
    $region31: #{tpu_custom_call.1} parent=1 // pred_check_branch
      %61 = sbr.rel (0) target = $region33
    $region32: #{tpu_custom_call.1} parent=1 // pred_region
      _
    $region33: #{tpu_custom_call.1} parent=1 // pred_fallthru
      _
    %62 = vsyncpa [#allocation4], 1
    %63 = vsyncpa [#allocation6], 1

</llo_original>
